<compile_context>
chip_gen: v7x
topology: tpu7x:2x2x1
jax: 0.10.0
libtpu: 0.0.40
codegen_flags: <defaults>
</compile_context>

<pallas_src>
import jax
import jax.numpy as jnp
from jax.experimental import pallas as pl
from jax.experimental.pallas import tpu as pltpu


def _round_up(x, m):
    return ((x + m - 1) // m) * m


def _patch_embed_kernel(x_ref, w_ref, b_ref, o_ref):
    # (TM, K) @ (K, Dp) on the MXU with f32 accumulation, f32 bias add,
    # then store in the (bf16) output dtype.
    acc = jnp.dot(x_ref[...], w_ref[...], preferred_element_type=jnp.float32)
    o_ref[...] = (acc + b_ref[...]).astype(o_ref.dtype)


def prepare_params(weight, bias, *, compute_dtype=jnp.bfloat16):
    """One-time prep of PyTorch Conv2d params -> matmul operands.

    weight: (dim, C, p, p), bias: (dim,).
    Returns (w2d, b2d, dim):
      w2d: (K, Dp) in compute_dtype, K = C*p*p (unpadded contraction dim),
           Dp = round_up(dim, 128) with zero-padded columns so kernel stores
           stay lane-dense.
      b2d: (1, Dp) float32 (f32 bias add in the epilogue).
    """
    dim, C, p, _ = weight.shape
    K = C * p * p
    Dp = _round_up(dim, 128)
    w2d = weight.reshape(dim, K).T.astype(compute_dtype)        # (K, dim)
    w2d = jnp.pad(w2d, ((0, 0), (0, Dp - dim)))                 # (K, Dp)
    b2d = jnp.pad(bias.astype(jnp.float32).reshape(1, dim),
                  ((0, 0), (0, Dp - dim)))                      # (1, Dp)
    return w2d, b2d, dim


def patch_embed(x, w2d, b2d, dim, patch_size, *, tm=1024,
                compute_dtype=jnp.bfloat16):
    """x: (B, C, H, W) (NCHW, like PyTorch). Returns (B, N, dim) in bf16."""
    B, C, H, W = x.shape
    p = patch_size
    Hp, Wp = H // p, W // p
    N = Hp * Wp
    M = B * N
    K, Dp = w2d.shape
    assert K == C * p * p, "weight/patch_size mismatch"

    # --- glue: patch extraction (im2col) in bf16; K flattened in (c, kh, kw)
    # order to match the Conv2d weight layout.  One extra HBM pass; see TODO.
    xc = x.astype(compute_dtype)
    xp = xc.reshape(B, C, Hp, p, Wp, p)
    xp = jnp.transpose(xp, (0, 2, 4, 1, 3, 5)).reshape(M, K)    # (M, K)

    act_b = jnp.dtype(compute_dtype).itemsize
    out_b = jnp.dtype(compute_dtype).itemsize

    # M tile: multiple of 8, capped so the double-buffered footprint fits the
    # smallest-VMEM chip (v7x: 64 MiB/TC) with headroom.
    TM = _round_up(min(tm, M), 8)

    def footprint(tm_):
        return (2 * tm_ * K * act_b          # streamed activation (double buf)
                + 2 * tm_ * Dp * out_b       # output tiles (double buf)
                + 2 * K * Dp * act_b         # resident weight
                + 2 * Dp * 4)                # resident bias

    while TM > 8 and footprint(TM) > 40 * 1024 * 1024:
        TM = _round_up(TM // 2, 8)
    vmem_limit = int(min(64 * 1024 * 1024,
                         footprint(TM) + 16 * 1024 * 1024))

    grid = (pl.cdiv(M, TM),)
    out = pl.pallas_call(
        _patch_embed_kernel,
        out_shape=jax.ShapeDtypeStruct((M, Dp), compute_dtype),
        grid_spec=pltpu.PrefetchScalarGridSpec(
            num_scalar_prefetch=0,
            grid=grid,
            in_specs=[
                pl.BlockSpec((TM, K), lambda i: (i, 0)),   # streamed tiles
                pl.BlockSpec((K, Dp), lambda i: (0, 0)),   # weight, resident
                pl.BlockSpec((1, Dp), lambda i: (0, 0)),   # bias, resident
            ],
            out_specs=pl.BlockSpec((TM, Dp), lambda i: (i, 0)),
        ),
        compiler_params=pltpu.CompilerParams(
            dimension_semantics=("parallel",),
            vmem_limit_bytes=vmem_limit,
        ),
        cost_estimate=pl.CostEstimate(
            flops=2 * M * K * Dp,
            transcendentals=0,
            bytes_accessed=(M * K * act_b       # activation read
                            + K * Dp * act_b    # weight read (once)
                            + M * Dp * out_b),  # bf16 output write
        ),
    )(xp, w2d, b2d)

    if Dp != dim:                      # only for non-128-multiple dims
        out = out[:, :dim]
    return out.reshape(B, N, dim)


def _reference(x, weight, bias, patch_size):
    # Pure-JAX f32 reference using conv_general_dilated (matches PyTorch Conv2d).
    y = jax.lax.conv_general_dilated(
        x, weight,
        window_strides=(patch_size, patch_size),
        padding="VALID",
        dimension_numbers=("NCHW", "OIHW", "NCHW"),
    ) + bias.reshape(1, -1, 1, 1)
    B, D, Hp, Wp = y.shape
    return jnp.transpose(y.reshape(B, D, Hp * Wp), (0, 2, 1))


if __name__ == "__main__":
    # Small shapes consistent with the module: Conv2d in_channels is fixed at 3.
    B, C, H, W = 2, 3, 16, 16
    dim, patch_size = 32, 4

    key = jax.random.PRNGKey(0)
    kx, kw, kb = jax.random.split(key, 3)
    x = jax.random.normal(kx, (B, C, H, W), dtype=jnp.float32)
    weight = jax.random.normal(kw, (dim, C, patch_size, patch_size),
                               dtype=jnp.float32) * 0.02
    bias = jax.random.normal(kb, (dim,), dtype=jnp.float32) * 0.02

    # One-time parameter prep (hoisted out of the per-call path).
    w2d, b2d, dim_out = prepare_params(weight, bias)

    out = patch_embed(x, w2d, b2d, dim_out, patch_size)
    out = jax.block_until_ready(out)

    ref = jax.block_until_ready(_reference(x, weight, bias, patch_size))
    assert out.shape == (B, (H // patch_size) * (W // patch_size), dim)
    # bf16 inputs + bf16 output -> looser tolerance vs. the f32 reference.
    err = float(jnp.max(jnp.abs(out.astype(jnp.float32) - ref)))
    assert jnp.allclose(out.astype(jnp.float32), ref, atol=2e-2, rtol=2e-2), err

    print("KERNEL_OK")
</pallas_src>

<mosaic_0001>
module attributes {stable_mosaic.version = 11 : i64} {
  func.func @_patch_embed_kernel(%arg0: i32, %arg1: memref<32x48xbf16, #tpu.memory_space<vmem>>, %arg2: memref<48x128xbf16, #tpu.memory_space<vmem>>, %arg3: memref<1x128xf32, #tpu.memory_space<vmem>>, %arg4: memref<32x128xbf16, #tpu.memory_space<vmem>>) attributes {dimension_semantics = [#tpu.dimension_semantics<parallel>], iteration_bounds = array<i64: 1>, scalar_prefetch = 0 : i64, scratch_operands = 0 : i64, tpu.core_type = #tpu.core_type<tc>, window_params = [{transform_indices = @transform_0, window_bounds = array<i64: 32, 48>}, {pipeline_mode = #tpu.pipeline_mode<synchronous>, transform_indices = @transform_1, window_bounds = array<i64: 48, 128>}, {pipeline_mode = #tpu.pipeline_mode<synchronous>, transform_indices = @transform_2, window_bounds = array<i64: 1, 128>}, {transform_indices = @transform_3, window_bounds = array<i64: 32, 128>}]} {
    %c0 = arith.constant 0 : index
    %c0_0 = arith.constant 0 : index
    %0 = vector.load %arg1[%c0, %c0_0] : memref<32x48xbf16, #tpu.memory_space<vmem>>, vector<32x48xbf16>
    %c0_1 = arith.constant 0 : index
    %c0_2 = arith.constant 0 : index
    %1 = vector.load %arg2[%c0_1, %c0_2] : memref<48x128xbf16, #tpu.memory_space<vmem>>, vector<48x128xbf16>
    %cst = arith.constant dense<0.000000e+00> : vector<32x128xf32>
    %2 = tpu.matmul %0, %1, %cst {dimension_numbers = #tpu.dot_dimension_numbers<[1], [0], [0], [1], [0, 0, 1, 1], [], []>} : vector<32x48xbf16>, vector<48x128xbf16>, vector<32x128xf32> -> vector<32x128xf32>
    %c0_3 = arith.constant 0 : index
    %c0_4 = arith.constant 0 : index
    %3 = vector.load %arg3[%c0_3, %c0_4] : memref<1x128xf32, #tpu.memory_space<vmem>>, vector<1x128xf32>
    %4 = vector.broadcast %3 : vector<1x128xf32> to vector<32x128xf32>
    %5 = arith.addf %2, %4 : vector<32x128xf32>
    %6 = arith.truncf %5 : vector<32x128xf32> to vector<32x128xbf16>
    %c0_5 = arith.constant 0 : index
    %c0_6 = arith.constant 0 : index
    %7 = vector.load %arg4[%c0_5, %c0_6] : memref<32x128xbf16, #tpu.memory_space<vmem>>, vector<32x128xbf16>
    tpu.vector_store %arg4[%c0_5, %c0_6], %6 {strides = array<i32>} : memref<32x128xbf16, #tpu.memory_space<vmem>>, vector<32x128xbf16>,
    return
  }
  func.func @transform_0(%arg0: i32) -> (i32, i32) {
    %c0_i32 = arith.constant 0 : i32
    %c0_i32_0 = arith.constant 0 : i32
    return %arg0, %c0_i32 : i32, i32
  }
  func.func @transform_1(%arg0: i32) -> (i32, i32) {
    %c0_i32 = arith.constant 0 : i32
    %c0_i32_0 = arith.constant 0 : i32
    %c0_i32_1 = arith.constant 0 : i32
    return %c0_i32, %c0_i32_0 : i32, i32
  }
  func.func @transform_2(%arg0: i32) -> (i32, i32) {
    %c0_i32 = arith.constant 0 : i32
    %c0_i32_0 = arith.constant 0 : i32
    %c0_i32_1 = arith.constant 0 : i32
    return %c0_i32, %c0_i32_0 : i32, i32
  }
  func.func @transform_3(%arg0: i32) -> (i32, i32) {
    %c0_i32 = arith.constant 0 : i32
    %c0_i32_0 = arith.constant 0 : i32
    return %arg0, %c0_i32 : i32, i32
  }
}

</mosaic_0001>

<llo_original>
// kernel: tpu_custom_call.1
$region0: #{tpu_custom_call.1}
  #allocation0 [shape = 'u32[]', space=smem, size = 0x4, offset = 0x4, fixed_abs, tag = 'smem constant byte address 0x4 - core index']
  #allocation1 [shape = 'u32[144,128]{1,0:T(1,128)}', space=vmem, size = 0x12000, scoped, tag = 'internal scratch']
  %s0 = inlined_call_operand.hbm [shape: bf16[32,48], index: 0, kind: input, shape index: {}]
  %s1 = inlined_call_operand.hbm [shape: bf16[48,128], index: 1, kind: input, shape index: {}]
  %s2 = inlined_call_operand.vmem [shape: f32[1,128], index: 2, kind: input, shape index: {}]
  %s3 = inlined_call_operand.hbm [shape: bf16[32,128], index: 3, kind: output, shape index: {}]
  %s4 = sld [smem:[#allocation0]]
  $region30: #{tpu_custom_call.1} parent=0
    _
  %s6 = ssub.s32 1, %s4
  %s7 = scalar_select 0, %s6, %s4
  $region1: #{tpu_custom_call.1} parent=0
    #allocation2 [shape = 'u8[8192]{0}', space=vmem, size = 0x2000, scoped, tag = 'input window, operand 0, single buffered']
    #allocation3 [shape = 's32[1]{0}', space=sflag, size = 0x4, scoped, tag = 'scoped memory for tpu_custom_call.1']
    #allocation4 [shape = 's32[1]{0}', space=sflag, size = 0x4, scoped, tag = 'scoped memory for tpu_custom_call.1']
    #allocation5 [shape = 'u8[12288]{0}', space=vmem, size = 0x3000, scoped, tag = 'input window, operand 1, single buffered']
    #allocation6 [shape = 's32[1]{0}', space=sflag, size = 0x4, scoped, tag = 'scoped memory for tpu_custom_call.1']
    #allocation7 [shape = 'u8[8192]{0}', space=vmem, size = 0x2000, scoped, tag = 'output window, operand 0, single buffered']
    %8 = vsyncpa [#allocation3], 0
    %9 = vsyncpa [#allocation6], 0
    %10 = vsyncpa [#allocation4], 0
    // Predicated region
    $region2: #{tpu_custom_call.1} parent=1 // pred_check
      _
    $region3: #{tpu_custom_call.1} parent=1 // pred_check_branch
      %12 = sbr.rel (0) target = $region5
    $region4: #{tpu_custom_call.1} parent=1 // pred_region
      %s14 = ssub.s32 256, 256
      %15 = vsyncadd [#allocation3], %s14
      %s16 = sshll.u32 [#allocation2], 4
      %s17 = int_to_ptr.vmem [resolvable:$true] %s16
      %22 = dma.hbm_to_vmem [thread:$0]  %s0, 256, %s17, [#allocation3], 64, 64, 4
    $region5: #{tpu_custom_call.1} parent=1 // pred_fallthru
      _
    // Predicated region
    $region6: #{tpu_custom_call.1} parent=1 // pred_check
      _
    $region7: #{tpu_custom_call.1} parent=1 // pred_check_branch
      %24 = sbr.rel (0) target = $region9
    $region8: #{tpu_custom_call.1} parent=1 // pred_region
      %s26 = ssub.s32 384, 384
      %27 = vsyncadd [#allocation6], %s26
      %s28 = sshll.u32 [#allocation5], 4
      %s29 = int_to_ptr.vmem [resolvable:$true] %s28
      %34 = dma.hbm_to_vmem [thread:$0]  %s1, 384, %s29, [#allocation6], 64, 64, 4
    $region9: #{tpu_custom_call.1} parent=1 // pred_fallthru
      _
    // Predicated region
    $region10: #{tpu_custom_call.1} parent=1 // pred_check
      _
    $region11: #{tpu_custom_call.1} parent=1 // pred_check_branch
      %36 = sbr.rel (0) target = $region13
    $region12: #{tpu_custom_call.1} parent=1 // pred_region
      _
    $region13: #{tpu_custom_call.1} parent=1 // pred_fallthru
      _
    // Predicated region
    $region14: #{tpu_custom_call.1} parent=1 // pred_check
      _
    $region15: #{tpu_custom_call.1} parent=1 // pred_check_branch
      %38 = sbr.rel (0) target = $region17
    $region16: #{tpu_custom_call.1} parent=1 // pred_region
      %39 = dma.done [#allocation3], 256
    $region17: #{tpu_custom_call.1} parent=1 // pred_fallthru
      _
    // Predicated region
    $region18: #{tpu_custom_call.1} parent=1 // pred_check
      _
    $region19: #{tpu_custom_call.1} parent=1 // pred_check_branch
      %41 = sbr.rel (0) target = $region21
    $region20: #{tpu_custom_call.1} parent=1 // pred_region
      %42 = dma.done [#allocation6], 384
    $region21: #{tpu_custom_call.1} parent=1 // pred_fallthru
      _
    %v44 = vld [vmem:[#allocation2] sm:$0xf]
    %v45 = vld [vmem:[#allocation2 + $0x4] sm:$0xf]
    %v46 = vld [vmem:[#allocation2 + $0x8] sm:$0xf]
    %v47 = vld [vmem:[#allocation2 + $0xc] sm:$0xf]
    %v48 = vld [vmem:[#allocation5] sm:$0xf]
    %v49 = vld [vmem:[#allocation5 + $0x4] sm:$0xf]
    %v50 = vld [vmem:[#allocation5 + $0x8] sm:$0xf]
    %v51 = vld [vmem:[#allocation5 + $0xc] sm:$0xf]
    %v52 = vld [vmem:[#allocation5 + $0x10] sm:$0xf]
    %v53 = vld [vmem:[#allocation5 + $0x14] sm:$0xf]
    %v54 = vld [vmem:[%s2] sm:$0x1]
    %v56 = vlaneseq
    %v57 = vshrl.u32 %v56, 7
    %v58 = vsub.s32 0, %v57
    %v59 = vrot.slane %v54, %v58
    %v65 = vunpack.c.l.b16 %v44
    %v66 = vunpack.c.l.b16 %v45
    %v67 = vunpack.c.l.b16 %v46
    %v68 = vunpack.c.l.b16 %v47
    %v69 = vpack.c.b16 %v66, %v65
    %v70 = vpack.c.b16 %v68, %v67
    %v77 = vunpack.c.l.b16 %v48
    %v78 = vunpack.c.l.b16 %v49
    %v79 = vunpack.c.l.b16 %v50
    %v80 = vunpack.c.l.b16 %v51
    %v81 = vunpack.c.l.b16 %v52
    %v82 = vunpack.c.l.b16 %v53
    %v83 = vpack.c.b16 %v78, %v77
    %v84 = vpack.c.b16 %v80, %v79
    %v85 = vpack.c.b16 %v82, %v81
    %vm89 = vcmask 392192
    %v91 = vsel %vm89, %v69, 0
    %v94 = vsel %vm89, %v70, 0
    %96 = vmatprep.subr.bf16.mxu0 0
    %97 = vmatpush1.bf16.msra.mxu0 %v83
    %98 = vmatprep.subr.bf16.mxu0 0
    %99 = vmatpush1.bf16.msra.mxu0 %v84
    %100 = vmatprep.subr.bf16.mxu0 0
    %101 = vmatpush1.bf16.msra.mxu0 %v85
    %102 = vmatprep.subr.bf16.mxu0 0
    %103 = vmatpush1.bf16.msra.mxu0 0
    %104 = vmatprep.subr.bf16.mxu0 0
    %105 = vmatpush1.bf16.msra.mxu0 0
    %106 = vmatprep.subr.bf16.mxu0 0
    %107 = vmatpush1.bf16.msra.mxu0 0
    %108 = vmatprep.subr.bf16.mxu0 0
    %109 = vmatpush1.bf16.msra.mxu0 0
    %110 = vmatprep.subr.bf16.mxu0 0
    %111 = vmatpush1.bf16.msra.mxu0 0
    %112 = vmatprep.subr.bf16.mxu0 0
    %113 = vmatpush1.bf16.msra.mxu0 0
    %114 = vmatprep.subr.bf16.mxu0 0
    %115 = vmatpush1.bf16.msra.mxu0 0
    %116 = vmatprep.subr.bf16.mxu0 0
    %117 = vmatpush1.bf16.msra.mxu0 0
    %118 = vmatprep.subr.bf16.mxu0 0
    %119 = vmatpush1.bf16.msra.mxu0 0
    %120 = vmatprep.subr.bf16.mxu0 0
    %121 = vmatpush1.bf16.msra.mxu0 0
    %122 = vmatprep.subr.bf16.mxu0 0
    %123 = vmatpush1.bf16.msra.mxu0 0
    %124 = vmatprep.subr.bf16.mxu0 0
    %125 = vmatpush1.bf16.msra.mxu0 0
    %126 = vmatprep.subr.bf16.mxu0 0
    %127 = vmatpush1.bf16.msra.mxu0 0
    %128 = vmatprep.mubr.bf16.mxu0 0
    %129 = vmatmul.mubr.bf16.gmra.mrb[0].mxu0 %v91
    %v130 = vpop.f32.mrb[0].mxu0
    %v131 = vadd.f32 %v59, %v130
    %v132 = vpop.f32.mrb[0].mxu0
    %v133 = vpop.f32.mrb[0].mxu0
    %v134 = vadd.f32 %v59, %v133
    %v135 = vpop.f32.mrb[0].mxu0
    %136 = vmatprep.mubr.bf16.mxu0 0
    %137 = vmatmul.mubr.bf16.gmra.mrb[0].mxu0 %v94
    %v138 = vpop.f32.mrb[0].mxu0
    %v139 = vadd.f32 %v59, %v138
    %v140 = vpop.f32.mrb[0].mxu0
    %v141 = vpop.f32.mrb[0].mxu0
    %v142 = vadd.f32 %v59, %v141
    %v143 = vpop.f32.mrb[0].mxu0
    %144 = vdwg.mxu0
    %v145 = vpack.c.bf16 %v134, %v131
    %v146 = vpack.c.bf16 %v142, %v139
    %v149 = vunpack.c.l.b16 %v145
    %v150 = vunpack.c.h.b16 %v145
    %v151 = vunpack.c.l.b16 %v146
    %v152 = vunpack.c.h.b16 %v146
    %v153 = vpack.c.b16 %v149, %v149
    %v154 = vpack.c.b16 %v150, %v150
    %v155 = vpack.c.b16 %v151, %v151
    %v156 = vpack.c.b16 %v152, %v152
    %161 = vst [vmem:[#allocation7] sm:$0xf] %v153
    %162 = vst [vmem:[#allocation7 + $0x4] sm:$0xf] %v154
    %163 = vst [vmem:[#allocation7 + $0x8] sm:$0xf] %v155
    %164 = vst [vmem:[#allocation7 + $0xc] sm:$0xf] %v156
    // Predicated region
    $region22: #{tpu_custom_call.1} parent=1 // pred_check
      _
    $region23: #{tpu_custom_call.1} parent=1 // pred_check_branch
      %166 = sbr.rel (0) target = $region25
    $region24: #{tpu_custom_call.1} parent=1 // pred_region
      %s168 = ssub.s32 256, 256
      %169 = vsyncadd [#allocation4], %s168
      %s170 = sshll.u32 [#allocation7], 4
      %s171 = int_to_ptr.vmem [resolvable:$true] %s170
      %176 = dma.vmem_to_hbm [thread:$0]  %s171, 256, %s3, [#allocation4], 64, 64, 4
    $region25: #{tpu_custom_call.1} parent=1 // pred_fallthru
      _
    // Predicated region
    $region26: #{tpu_custom_call.1} parent=1 // pred_check
      _
    $region27: #{tpu_custom_call.1} parent=1 // pred_check_branch
      %178 = sbr.rel (0) target = $region29
    $region28: #{tpu_custom_call.1} parent=1 // pred_region
      %179 = dma.done [#allocation4], 256
    $region29: #{tpu_custom_call.1} parent=1 // pred_fallthru
      _
    %180 = vsyncpa [#allocation3], 1
    %181 = vsyncpa [#allocation6], 1
    %182 = vsyncpa [#allocation4], 1

</llo_original>
